<compile_context>
chip_gen: v5e
topology: v5e:2x2
jax: 0.10.0
libtpu: 0.0.40
codegen_flags: <defaults>
</compile_context>

<pallas_src>
import functools

import jax
import jax.numpy as jnp
from jax.experimental import pallas as pl
from jax.experimental.pallas import tpu as pltpu

EPS = 1e-5
NEG_SLOPE = 0.01


# ----------------------------------------------------------------------------- helpers
def _leaky(h):
    # max(h, 0.01*h) == LeakyReLU(0.01): one mul + one max on the VPU.
    return jnp.maximum(h, NEG_SLOPE * h)


def _affine_from_stats(stats, gb, inv_b):
    """stats: (2, N) [col-sum; col-sum-of-squares] over the FULL batch.
    gb: (2, N) [gamma; beta].  Returns (scale, shift) so BN(h) = h*scale + shift."""
    mean = stats[0:1, :] * inv_b
    var = jnp.maximum(stats[1:2, :] * inv_b - mean * mean, 0.0)   # biased variance
    scale = gb[0:1, :] * jax.lax.rsqrt(var + EPS)                 # rsqrt -> EUP
    shift = gb[1:2, :] - mean * scale
    return scale, shift


def _resident_spec(shape):
    """Full-array block, constant index_map -> VMEM-resident, DMA'd once."""
    nd = len(shape)
    return pl.BlockSpec(shape, lambda i: (0,) * nd)


def _pick_tb(b):
    """Largest MXU-friendly batch tile that divides B (256 fills v6e/v7x MXU M-dim)."""
    for tb in (256, 128, 64, 32, 16, 8):
        if b % tb == 0:
            return tb
    return b  # odd batch -> single block (fused path)


# ----------------------------------------------------------------------------- kernels
def _fused_kernel(x_ref, w1_ref, gb1_ref, w2_ref, gb2_ref, w3_ref, b3_ref, o_ref):
    """Whole batch in one block: everything fused, BN stats computed in-VMEM."""

    def bn_leaky(h, gb):
        mean = jnp.mean(h, axis=0, keepdims=True)
        var = jnp.mean((h - mean) ** 2, axis=0, keepdims=True)   # biased variance
        scale = gb[0:1, :] * jax.lax.rsqrt(var + EPS)
        shift = gb[1:2, :] - mean * scale
        return _leaky(h * scale + shift)

    x = x_ref[...].astype(jnp.bfloat16)
    h1 = bn_leaky(jnp.dot(x, w1_ref[...], preferred_element_type=jnp.float32),
                  gb1_ref[...])
    h2 = bn_leaky(jnp.dot(h1.astype(jnp.bfloat16), w2_ref[...],
                          preferred_element_type=jnp.float32),
                  gb2_ref[...])
    out = jnp.dot(h2.astype(jnp.bfloat16), w3_ref[...],
                  preferred_element_type=jnp.float32) + b3_ref[...]
    o_ref[...] = out.astype(o_ref.dtype)


def _l1_kernel(x_ref, w1_ref, h1_ref, stats_ref):
    """Layer-1 pre-activation (bias elided by BN) + global column sum / sum-sq."""
    h = jnp.dot(x_ref[...].astype(jnp.bfloat16), w1_ref[...],
                preferred_element_type=jnp.float32)
    h1_ref[...] = h

    @pl.when(pl.program_id(0) == 0)
    def _():
        stats_ref[...] = jnp.zeros_like(stats_ref)

    stats_ref[0:1, :] += jnp.sum(h, axis=0, keepdims=True)
    stats_ref[1:2, :] += jnp.sum(h * h, axis=0, keepdims=True)


def _mid_kernel(h_ref, stats_in_ref, gb_ref, w_ref, h_out_ref, stats_out_ref, *, inv_b):
    """Apply BN (global stats) + LeakyReLU, then next matmul; accumulate next stats."""
    scale, shift = _affine_from_stats(stats_in_ref[...], gb_ref[...], inv_b)
    h = _leaky(h_ref[...] * scale + shift)
    out = jnp.dot(h.astype(jnp.bfloat16), w_ref[...],
                  preferred_element_type=jnp.float32)
    h_out_ref[...] = out

    @pl.when(pl.program_id(0) == 0)
    def _():
        stats_out_ref[...] = jnp.zeros_like(stats_out_ref)

    stats_out_ref[0:1, :] += jnp.sum(out, axis=0, keepdims=True)
    stats_out_ref[1:2, :] += jnp.sum(out * out, axis=0, keepdims=True)


def _final_kernel(h_ref, stats_ref, gb_ref, w_ref, b_ref, o_ref, *, inv_b):
    """Apply BN (global stats) + LeakyReLU, then projection head (bias kept)."""
    scale, shift = _affine_from_stats(stats_ref[...], gb_ref[...], inv_b)
    h = _leaky(h_ref[...] * scale + shift)
    out = jnp.dot(h.astype(jnp.bfloat16), w_ref[...],
                  preferred_element_type=jnp.float32) + b_ref[...]
    o_ref[...] = out.astype(o_ref.dtype)


# ----------------------------------------------------------------------------- wrappers
def _mlp_fused(x, w1, gb1, w2, gb2, w3, b3):
    B = x.shape[0]
    P = w3.shape[1]

    def full_spec(arr):
        nd = arr.ndim
        return pl.BlockSpec(arr.shape, lambda *_, _nd=nd: (0,) * _nd)

    operands = (x, w1, gb1, w2, gb2, w3, b3)
    return pl.pallas_call(
        _fused_kernel,
        out_shape=jax.ShapeDtypeStruct((B, P), jnp.float32),
        in_specs=[full_spec(a) for a in operands],
        out_specs=pl.BlockSpec((B, P), lambda: (0, 0)),
    )(*operands)


def _mlp_tiled(x, w1, gb1, w2, gb2, w3, b3, *, tb):
    B, D = x.shape
    H1, H2, P = w1.shape[1], w2.shape[1], w3.shape[1]
    nt = B // tb
    inv_b = 1.0 / float(B)

    def tiled(width):
        return pl.BlockSpec((tb, width), lambda i: (i, 0))

    arb = pltpu.CompilerParams(dimension_semantics=("arbitrary",))
    par = pltpu.CompilerParams(dimension_semantics=("parallel",))

    # --- pass 1: h1_pre = x @ w1, accumulate global BN1 stats ---------------------
    h1, stats1 = pl.pallas_call(
        _l1_kernel,
        grid=(nt,),
        in_specs=[tiled(D), _resident_spec(w1.shape)],
        out_specs=(tiled(H1), _resident_spec((2, H1))),
        out_shape=(jax.ShapeDtypeStruct((B, H1), jnp.float32),
                   jax.ShapeDtypeStruct((2, H1), jnp.float32)),
        compiler_params=arb,
    )(x, w1)

    # --- pass 2: BN1 + LeakyReLU + (· @ w2), accumulate global BN2 stats ----------
    h2, stats2 = pl.pallas_call(
        functools.partial(_mid_kernel, inv_b=inv_b),
        grid=(nt,),
        in_specs=[tiled(H1), _resident_spec((2, H1)),
                  _resident_spec(gb1.shape), _resident_spec(w2.shape)],
        out_specs=(tiled(H2), _resident_spec((2, H2))),
        out_shape=(jax.ShapeDtypeStruct((B, H2), jnp.float32),
                   jax.ShapeDtypeStruct((2, H2), jnp.float32)),
        compiler_params=arb,
    )(h1, stats1, gb1, w2)

    # --- pass 3: BN2 + LeakyReLU + projection head --------------------------------
    out = pl.pallas_call(
        functools.partial(_final_kernel, inv_b=inv_b),
        grid=(nt,),
        in_specs=[tiled(H2), _resident_spec((2, H2)),
                  _resident_spec(gb2.shape), _resident_spec(w3.shape),
                  _resident_spec(b3.shape)],
        out_specs=tiled(P),
        out_shape=jax.ShapeDtypeStruct((B, P), jnp.float32),
        compiler_params=par,
    )(h2, stats2, gb2, w3, b3)
    return out


def mlp_forward(x, params, *, block_b=None):
    """x: (B, input_size) float32.  params: tuple from init_params."""
    (w1, b1, gb1, w2, b2, gb2, w3, b3) = params
    del b1, b2  # pre-BN biases are exactly cancelled by BatchNorm's mean subtraction

    B = x.shape[0]
    tb = _pick_tb(B) if block_b is None else block_b
    if block_b is not None and B % block_b != 0:
        tb = B  # fall back to a single block rather than padding BN stats

    if tb >= B:  # single tile -> fully fused, no intermediate HBM round trips
        return _mlp_fused(x, w1, gb1, w2, gb2, w3, b3)
    return _mlp_tiled(x, w1, gb1, w2, gb2, w3, b3, tb=tb)


# ----------------------------------------------------------------------------- params / reference
def init_params(key, input_size, projection_size, hid1=512, hid2=256):
    """Xavier-normal-ish init.  Weights stored (in, out) bf16; BN gamma/beta packed
    as (2, N) f32 [gamma; beta].  b1/b2 are nonzero but only consumed by the pure-JAX
    reference — the kernel omits them (cancelled by BN's mean subtraction)."""
    k1, k2, k3, kb1, kb2 = jax.random.split(key, 5)

    def xavier(k, fan_in, fan_out):
        std = (2.0 / (fan_in + fan_out)) ** 0.5
        w = std * jax.random.normal(k, (fan_in, fan_out), dtype=jnp.float32)
        return w.astype(jnp.bfloat16)

    def gb(n):
        return jnp.concatenate([jnp.ones((1, n), jnp.float32),    # gamma
                                jnp.zeros((1, n), jnp.float32)],  # beta
                               axis=0)

    w1 = xavier(k1, input_size, hid1)
    b1 = 0.1 * jax.random.normal(kb1, (1, hid1), dtype=jnp.float32)
    w2 = xavier(k2, hid1, hid2)
    b2 = 0.1 * jax.random.normal(kb2, (1, hid2), dtype=jnp.float32)
    w3 = xavier(k3, hid2, projection_size)
    b3 = jnp.zeros((1, projection_size), jnp.float32)
    return (w1, b1, gb(hid1), w2, b2, gb(hid2), w3, b3)


def mlp_reference(x, params):
    """Pure-JAX reference written the 'PyTorch way' (pre-BN biases included,
    (h-mean)/sqrt(var+eps) form, batch statistics), same bf16/f32 matmul scheme."""
    (w1, b1, gb1, w2, b2, gb2, w3, b3) = params

    def bn_leaky(h, gb):
        g, be = gb[0:1, :], gb[1:2, :]
        m = jnp.mean(h, axis=0, keepdims=True)
        v = jnp.mean((h - m) ** 2, axis=0, keepdims=True)
        h = (h - m) / jnp.sqrt(v + EPS) * g + be
        return jnp.where(h > 0, h, NEG_SLOPE * h)

    def dot(a, w):
        return jnp.dot(a.astype(jnp.bfloat16), w, preferred_element_type=jnp.float32)

    h = bn_leaky(dot(x, w1) + b1, gb1)
    h = bn_leaky(dot(h, w2) + b2, gb2)
    return dot(h, w3) + b3


# ----------------------------------------------------------------------------- main
if __name__ == "__main__":
    key = jax.random.PRNGKey(0)
    kx1, kx2, kp = jax.random.split(key, 3)

    input_size = 128
    projection_size = 128
    params = init_params(kp, input_size, projection_size)

    # Small batch -> fused single-block path.
    x_small = jax.random.normal(kx1, (8, input_size), dtype=jnp.float32)
    out_small = jax.block_until_ready(mlp_forward(x_small, params))
    ref_small = mlp_reference(x_small, params)
    assert out_small.shape == (8, projection_size)
    assert jnp.allclose(out_small, ref_small, atol=3e-3, rtol=3e-3), \
        "fused path mismatch vs JAX reference"

    # Larger batch -> batch-tiled path (2 tiles of 128) with global BN statistics.
    x_big = jax.random.normal(kx2, (256, input_size), dtype=jnp.float32)
    out_big = jax.block_until_ready(mlp_forward(x_big, params, block_b=128))
    ref_big = mlp_reference(x_big, params)
    assert out_big.shape == (256, projection_size)
    assert jnp.allclose(out_big, ref_big, atol=3e-3, rtol=3e-3), \
        "tiled path mismatch vs JAX reference"

    print("KERNEL_OK")
</pallas_src>

<mosaic_0001>
module attributes {stable_mosaic.version = 11 : i64} {
  func.func @_fused_kernel(%arg0: memref<8x128xf32, #tpu.memory_space<vmem>>, %arg1: memref<128x512xbf16, #tpu.memory_space<vmem>>, %arg2: memref<2x512xf32, #tpu.memory_space<vmem>>, %arg3: memref<512x256xbf16, #tpu.memory_space<vmem>>, %arg4: memref<2x256xf32, #tpu.memory_space<vmem>>, %arg5: memref<256x128xbf16, #tpu.memory_space<vmem>>, %arg6: memref<1x128xf32, #tpu.memory_space<vmem>>, %arg7: memref<8x128xf32, #tpu.memory_space<vmem>>) attributes {dimension_semantics = [], scalar_prefetch = 0 : i64, scratch_operands = 0 : i64, tpu.core_type = #tpu.core_type<tc>} {
    %c0 = arith.constant 0 : index
    %c0_0 = arith.constant 0 : index
    %0 = vector.load %arg0[%c0, %c0_0] : memref<8x128xf32, #tpu.memory_space<vmem>>, vector<8x128xf32>
    %1 = arith.truncf %0 : vector<8x128xf32> to vector<8x128xbf16>
    %c0_1 = arith.constant 0 : index
    %c0_2 = arith.constant 0 : index
    %2 = vector.load %arg1[%c0_1, %c0_2] : memref<128x512xbf16, #tpu.memory_space<vmem>>, vector<128x512xbf16>
    %cst = arith.constant dense<0.000000e+00> : vector<8x512xf32>
    %3 = tpu.matmul %1, %2, %cst {dimension_numbers = #tpu.dot_dimension_numbers<[1], [0], [0], [1], [0, 0, 1, 1], [], []>} : vector<8x128xbf16>, vector<128x512xbf16>, vector<8x512xf32> -> vector<8x512xf32>
    %c0_3 = arith.constant 0 : index
    %c0_4 = arith.constant 0 : index
    %4 = vector.load %arg2[%c0_3, %c0_4] : memref<2x512xf32, #tpu.memory_space<vmem>>, vector<2x512xf32>
    %cst_5 = arith.constant dense<0.000000e+00> : vector<512xf32>
    %5 = vector.multi_reduction <add>, %3, %cst_5 [0] : vector<8x512xf32> to vector<512xf32>
    %6 = vector.shape_cast %5 : vector<512xf32> to vector<1x512xf32>
    %cst_6 = arith.constant 8.000000e+00 : f32
    %7 = vector.broadcast %cst_6 : f32 to vector<1x512xf32>
    %8 = arith.divf %6, %7 : vector<1x512xf32>
    %9 = vector.broadcast %8 : vector<1x512xf32> to vector<8x512xf32>
    %10 = arith.subf %3, %9 : vector<8x512xf32>
    %11 = arith.mulf %10, %10 : vector<8x512xf32>
    %cst_7 = arith.constant dense<0.000000e+00> : vector<512xf32>
    %12 = vector.multi_reduction <add>, %11, %cst_7 [0] : vector<8x512xf32> to vector<512xf32>
    %13 = vector.shape_cast %12 : vector<512xf32> to vector<1x512xf32>
    %cst_8 = arith.constant 8.000000e+00 : f32
    %14 = vector.broadcast %cst_8 : f32 to vector<1x512xf32>
    %15 = arith.divf %13, %14 : vector<1x512xf32>
    %16 = vector.extract_strided_slice %4 {offsets = [0, 0], sizes = [1, 512], strides = [1, 1]} : vector<2x512xf32> to vector<1x512xf32>
    %cst_9 = arith.constant 9.99999974E-6 : f32
    %17 = vector.broadcast %cst_9 : f32 to vector<1x512xf32>
    %18 = arith.addf %15, %17 : vector<1x512xf32>
    %19 = math.rsqrt %18 : vector<1x512xf32>
    %20 = arith.mulf %16, %19 : vector<1x512xf32>
    %21 = vector.extract_strided_slice %4 {offsets = [1, 0], sizes = [1, 512], strides = [1, 1]} : vector<2x512xf32> to vector<1x512xf32>
    %22 = arith.mulf %8, %20 : vector<1x512xf32>
    %23 = arith.subf %21, %22 : vector<1x512xf32>
    %24 = vector.broadcast %20 : vector<1x512xf32> to vector<8x512xf32>
    %25 = arith.mulf %3, %24 : vector<8x512xf32>
    %26 = vector.broadcast %23 : vector<1x512xf32> to vector<8x512xf32>
    %27 = arith.addf %25, %26 : vector<8x512xf32>
    %cst_10 = arith.constant 0.00999999977 : f32
    %28 = vector.broadcast %cst_10 : f32 to vector<8x512xf32>
    %29 = arith.mulf %28, %27 : vector<8x512xf32>
    %30 = arith.maximumf %27, %29 : vector<8x512xf32>
    %31 = arith.truncf %30 : vector<8x512xf32> to vector<8x512xbf16>
    %c0_11 = arith.constant 0 : index
    %c0_12 = arith.constant 0 : index
    %32 = vector.load %arg3[%c0_11, %c0_12] : memref<512x256xbf16, #tpu.memory_space<vmem>>, vector<512x256xbf16>
    %cst_13 = arith.constant dense<0.000000e+00> : vector<8x256xf32>
    %33 = tpu.matmul %31, %32, %cst_13 {dimension_numbers = #tpu.dot_dimension_numbers<[1], [0], [0], [1], [0, 0, 1, 1], [], []>} : vector<8x512xbf16>, vector<512x256xbf16>, vector<8x256xf32> -> vector<8x256xf32>
    %c0_14 = arith.constant 0 : index
    %c0_15 = arith.constant 0 : index
    %34 = vector.load %arg4[%c0_14, %c0_15] : memref<2x256xf32, #tpu.memory_space<vmem>>, vector<2x256xf32>
    %cst_16 = arith.constant dense<0.000000e+00> : vector<256xf32>
    %35 = vector.multi_reduction <add>, %33, %cst_16 [0] : vector<8x256xf32> to vector<256xf32>
    %36 = vector.shape_cast %35 : vector<256xf32> to vector<1x256xf32>
    %cst_17 = arith.constant 8.000000e+00 : f32
    %37 = vector.broadcast %cst_17 : f32 to vector<1x256xf32>
    %38 = arith.divf %36, %37 : vector<1x256xf32>
    %39 = vector.broadcast %38 : vector<1x256xf32> to vector<8x256xf32>
    %40 = arith.subf %33, %39 : vector<8x256xf32>
    %41 = arith.mulf %40, %40 : vector<8x256xf32>
    %cst_18 = arith.constant dense<0.000000e+00> : vector<256xf32>
    %42 = vector.multi_reduction <add>, %41, %cst_18 [0] : vector<8x256xf32> to vector<256xf32>
    %43 = vector.shape_cast %42 : vector<256xf32> to vector<1x256xf32>
    %cst_19 = arith.constant 8.000000e+00 : f32
    %44 = vector.broadcast %cst_19 : f32 to vector<1x256xf32>
    %45 = arith.divf %43, %44 : vector<1x256xf32>
    %46 = vector.extract_strided_slice %34 {offsets = [0, 0], sizes = [1, 256], strides = [1, 1]} : vector<2x256xf32> to vector<1x256xf32>
    %cst_20 = arith.constant 9.99999974E-6 : f32
    %47 = vector.broadcast %cst_20 : f32 to vector<1x256xf32>
    %48 = arith.addf %45, %47 : vector<1x256xf32>
    %49 = math.rsqrt %48 : vector<1x256xf32>
    %50 = arith.mulf %46, %49 : vector<1x256xf32>
    %51 = vector.extract_strided_slice %34 {offsets = [1, 0], sizes = [1, 256], strides = [1, 1]} : vector<2x256xf32> to vector<1x256xf32>
    %52 = arith.mulf %38, %50 : vector<1x256xf32>
    %53 = arith.subf %51, %52 : vector<1x256xf32>
    %54 = vector.broadcast %50 : vector<1x256xf32> to vector<8x256xf32>
    %55 = arith.mulf %33, %54 : vector<8x256xf32>
    %56 = vector.broadcast %53 : vector<1x256xf32> to vector<8x256xf32>
    %57 = arith.addf %55, %56 : vector<8x256xf32>
    %cst_21 = arith.constant 0.00999999977 : f32
    %58 = vector.broadcast %cst_21 : f32 to vector<8x256xf32>
    %59 = arith.mulf %58, %57 : vector<8x256xf32>
    %60 = arith.maximumf %57, %59 : vector<8x256xf32>
    %61 = arith.truncf %60 : vector<8x256xf32> to vector<8x256xbf16>
    %c0_22 = arith.constant 0 : index
    %c0_23 = arith.constant 0 : index
    %62 = vector.load %arg5[%c0_22, %c0_23] : memref<256x128xbf16, #tpu.memory_space<vmem>>, vector<256x128xbf16>
    %cst_24 = arith.constant dense<0.000000e+00> : vector<8x128xf32>
    %63 = tpu.matmul %61, %62, %cst_24 {dimension_numbers = #tpu.dot_dimension_numbers<[1], [0], [0], [1], [0, 0, 1, 1], [], []>} : vector<8x256xbf16>, vector<256x128xbf16>, vector<8x128xf32> -> vector<8x128xf32>
    %c0_25 = arith.constant 0 : index
    %c0_26 = arith.constant 0 : index
    %64 = vector.load %arg6[%c0_25, %c0_26] : memref<1x128xf32, #tpu.memory_space<vmem>>, vector<1x128xf32>
    %65 = vector.broadcast %64 : vector<1x128xf32> to vector<8x128xf32>
    %66 = arith.addf %63, %65 : vector<8x128xf32>
    %c0_27 = arith.constant 0 : index
    %c0_28 = arith.constant 0 : index
    %67 = vector.load %arg7[%c0_27, %c0_28] : memref<8x128xf32, #tpu.memory_space<vmem>>, vector<8x128xf32>
    tpu.vector_store %arg7[%c0_27, %c0_28], %66 {strides = array<i32>} : memref<8x128xf32, #tpu.memory_space<vmem>>, vector<8x128xf32>,
    return
  }
}

</mosaic_0001>

<llo_original>
// kernel: tpu_custom_call.1
$region0: #{tpu_custom_call.1}
  #allocation0 [shape = 'u32[]', space=smem, size = 0x4, offset = 0x4, fixed_abs, tag = 'smem constant byte address 0x4 - core index']
  #allocation1 [shape = 'u32[72,128]{1,0:T(1,128)}', space=vmem, size = 0x9000, scoped, tag = 'internal scratch']
  %s0 = inlined_call_operand.hbm [shape: f32[8,128], index: 0, kind: input, shape index: {}]
  %s1 = inlined_call_operand.hbm [shape: bf16[128,512], index: 1, kind: input, shape index: {}]
  %s2 = inlined_call_operand.hbm [shape: f32[2,512], index: 2, kind: input, shape index: {}]
  %s3 = inlined_call_operand.hbm [shape: bf16[512,256], index: 3, kind: input, shape index: {}]
  %s4 = inlined_call_operand.hbm [shape: f32[2,256], index: 4, kind: input, shape index: {}]
  %s5 = inlined_call_operand.hbm [shape: bf16[256,128], index: 5, kind: input, shape index: {}]
  %s6 = inlined_call_operand.vmem [shape: f32[1,128], index: 6, kind: input, shape index: {}]
  %s7 = inlined_call_operand.hbm [shape: f32[8,128], index: 7, kind: output, shape index: {}]
  %s8 = sld [smem:[#allocation0]]
  $region62: #{tpu_custom_call.1} parent=0
    _
  %s10 = ssub.s32 1, %s8
  %s11 = scalar_select 0, %s10, %s8
  $region1: #{tpu_custom_call.1} parent=0
    #allocation2 [shape = 'u8[4096]{0}', space=vmem, size = 0x1000, scoped, tag = 'input window, operand 0, single buffered']
    #allocation3 [shape = 's32[1]{0}', space=sflag, size = 0x4, scoped, tag = 'scoped memory for tpu_custom_call.1']
    #allocation4 [shape = 's32[1]{0}', space=sflag, size = 0x4, scoped, tag = 'scoped memory for tpu_custom_call.1']
    #allocation5 [shape = 'u8[131072]{0}', space=vmem, size = 0x20000, scoped, tag = 'input window, operand 1, single buffered']
    #allocation6 [shape = 's32[1]{0}', space=sflag, size = 0x4, scoped, tag = 'scoped memory for tpu_custom_call.1']
    #allocation7 [shape = 'u8[4096]{0}', space=vmem, size = 0x1000, scoped, tag = 'input window, operand 2, single buffered']
    #allocation8 [shape = 'u8[262144]{0}', space=vmem, size = 0x40000, scoped, tag = 'input window, operand 3, single buffered']
    #allocation9 [shape = 's32[1]{0}', space=sflag, size = 0x4, scoped, tag = 'scoped memory for tpu_custom_call.1']
    #allocation10 [shape = 'u8[2048]{0}', space=vmem, size = 0x800, scoped, tag = 'input window, operand 4, single buffered']
    #allocation11 [shape = 'u8[65536]{0}', space=vmem, size = 0x10000, scoped, tag = 'input window, operand 5, single buffered']
    #allocation12 [shape = 's32[1]{0}', space=sflag, size = 0x4, scoped, tag = 'scoped memory for tpu_custom_call.1']
    #allocation13 [shape = 'u8[4096]{0}', space=vmem, size = 0x1000, scoped, tag = 'output window, operand 0, single buffered']
    %12 = vsyncpa [#allocation3], 0
    %13 = vsyncpa [#allocation6], 0
    %14 = vsyncpa [#allocation9], 0
    %15 = vsyncpa [#allocation12], 0
    %16 = vsyncpa [#allocation4], 0
    // Predicated region
    $region2: #{tpu_custom_call.1} parent=1 // pred_check
      _
    $region3: #{tpu_custom_call.1} parent=1 // pred_check_branch
      %18 = sbr.rel (0) target = $region5
    $region4: #{tpu_custom_call.1} parent=1 // pred_region
      %20 = vsyncadd [#allocation3], 0
      %s22 = sshll.u32 %s0, 4
      %s23 = int_to_ptr.hbm [resolvable:$true] %s22
      %s24 = sshll.u32 [#allocation2], 4
      %s25 = int_to_ptr.vmem [resolvable:$true] %s24
      %27 = dma.hbm_to_vmem [thread:$0]  %s23, 128, %s25, [#allocation3]
    $region5: #{tpu_custom_call.1} parent=1 // pred_fallthru
      _
    // Predicated region
    $region6: #{tpu_custom_call.1} parent=1 // pred_check
      _
    $region7: #{tpu_custom_call.1} parent=1 // pred_check_branch
      %29 = sbr.rel (0) target = $region9
    $region8: #{tpu_custom_call.1} parent=1 // pred_region
      %31 = vsyncadd [#allocation6], 0
      %s32 = sshll.u32 %s1, 4
      %s33 = int_to_ptr.hbm [resolvable:$true] %s32
      %s34 = sshll.u32 [#allocation5], 4
      %s35 = int_to_ptr.vmem [resolvable:$true] %s34
      %40 = dma.hbm_to_vmem [thread:$0]  %s33, 4096, %s35, [#allocation6], 256, 256, 16
    $region9: #{tpu_custom_call.1} parent=1 // pred_fallthru
      _
    // Predicated region
    $region10: #{tpu_custom_call.1} parent=1 // pred_check
      _
    $region11: #{tpu_custom_call.1} parent=1 // pred_check_branch
      %42 = sbr.rel (0) target = $region13
    $region12: #{tpu_custom_call.1} parent=1 // pred_region
      %44 = vsyncadd [#allocation6], 0
      %s46 = sshll.u32 %s2, 4
      %s47 = int_to_ptr.hbm [resolvable:$true] %s46
      %s48 = sshll.u32 [#allocation7], 4
      %s49 = int_to_ptr.vmem [resolvable:$true] %s48
      %51 = dma.hbm_to_vmem [thread:$0]  %s47, 128, %s49, [#allocation6]
    $region13: #{tpu_custom_call.1} parent=1 // pred_fallthru
      _
    // Predicated region
    $region14: #{tpu_custom_call.1} parent=1 // pred_check
      _
    $region15: #{tpu_custom_call.1} parent=1 // pred_check_branch
      %53 = sbr.rel (0) target = $region17
    $region16: #{tpu_custom_call.1} parent=1 // pred_region
      %55 = vsyncadd [#allocation9], 0
      %s56 = sshll.u32 %s3, 4
      %s57 = int_to_ptr.hbm [resolvable:$true] %s56
      %s58 = sshll.u32 [#allocation8], 4
      %s59 = int_to_ptr.vmem [resolvable:$true] %s58
      %64 = dma.hbm_to_vmem [thread:$0]  %s57, 8192, %s59, [#allocation9], 128, 128, 8
    $region17: #{tpu_custom_call.1} parent=1 // pred_fallthru
      _
    // Predicated region
    $region18: #{tpu_custom_call.1} parent=1 // pred_check
      _
    $region19: #{tpu_custom_call.1} parent=1 // pred_check_branch
      %66 = sbr.rel (0) target = $region21
    $region20: #{tpu_custom_call.1} parent=1 // pred_region
      %68 = vsyncadd [#allocation9], 0
      %s70 = sshll.u32 %s4, 4
      %s71 = int_to_ptr.hbm [resolvable:$true] %s70
      %s72 = sshll.u32 [#allocation10], 4
      %s73 = int_to_ptr.vmem [resolvable:$true] %s72
      %75 = dma.hbm_to_vmem [thread:$0]  %s71, 64, %s73, [#allocation9]
    $region21: #{tpu_custom_call.1} parent=1 // pred_fallthru
      _
    // Predicated region
    $region22: #{tpu_custom_call.1} parent=1 // pred_check
      _
    $region23: #{tpu_custom_call.1} parent=1 // pred_check_branch
      %77 = sbr.rel (0) target = $region25
    $region24: #{tpu_custom_call.1} parent=1 // pred_region
      %79 = vsyncadd [#allocation12], 0
      %s80 = sshll.u32 %s5, 4
      %s81 = int_to_ptr.hbm [resolvable:$true] %s80
      %s82 = sshll.u32 [#allocation11], 4
      %s83 = int_to_ptr.vmem [resolvable:$true] %s82
      %88 = dma.hbm_to_vmem [thread:$0]  %s81, 2048, %s83, [#allocation12], 64, 64, 4
    $region25: #{tpu_custom_call.1} parent=1 // pred_fallthru
      _
    // Predicated region
    $region26: #{tpu_custom_call.1} parent=1 // pred_check
      _
    $region27: #{tpu_custom_call.1} parent=1 // pred_check_branch
      %90 = sbr.rel (0) target = $region29
    $region28: #{tpu_custom_call.1} parent=1 // pred_region
      _
    $region29: #{tpu_custom_call.1} parent=1 // pred_fallthru
      _
    // Predicated region
    $region30: #{tpu_custom_call.1} parent=1 // pred_check
      _
    $region31: #{tpu_custom_call.1} parent=1 // pred_check_branch
      %92 = sbr.rel (0) target = $region33
    $region32: #{tpu_custom_call.1} parent=1 // pred_region
      %94 = dma.done [#allocation3], 128
    $region33: #{tpu_custom_call.1} parent=1 // pred_fallthru
      _
    // Predicated region
    $region34: #{tpu_custom_call.1} parent=1 // pred_check
      _
    $region35: #{tpu_custom_call.1} parent=1 // pred_check_branch
      %96 = sbr.rel (0) target = $region37
    $region36: #{tpu_custom_call.1} parent=1 // pred_region
      %98 = dma.done [#allocation6], 4096
    $region37: #{tpu_custom_call.1} parent=1 // pred_fallthru
      _
    // Predicated region
    $region38: #{tpu_custom_call.1} parent=1 // pred_check
      _
    $region39: #{tpu_custom_call.1} parent=1 // pred_check_branch
      %100 = sbr.rel (0) target = $region41
    $region40: #{tpu_custom_call.1} parent=1 // pred_region
      %102 = dma.done [#allocation6], 128
    $region41: #{tpu_custom_call.1} parent=1 // pred_fallthru
      _
    // Predicated region
    $region42: #{tpu_custom_call.1} parent=1 // pred_check
      _
    $region43: #{tpu_custom_call.1} parent=1 // pred_check_branch
      %104 = sbr.rel (0) target = $region45
    $region44: #{tpu_custom_call.1} parent=1 // pred_region
      %106 = dma.done [#allocation9], 8192
    $region45: #{tpu_custom_call.1} parent=1 // pred_fallthru
      _
    // Predicated region
    $region46: #{tpu_custom_call.1} parent=1 // pred_check
      _
    $region47: #{tpu_custom_call.1} parent=1 // pred_check_branch
      %108 = sbr.rel (0) target = $region49
    $region48: #{tpu_custom_call.1} parent=1 // pred_region
      %110 = dma.done [#allocation9], 64
    $region49: #{tpu_custom_call.1} parent=1 // pred_fallthru
      _
    // Predicated region
    $region50: #{tpu_custom_call.1} parent=1 // pred_check
      _
    $region51: #{tpu_custom_call.1} parent=1 // pred_check_branch
      %112 = sbr.rel (0) target = $region53
    $region52: #{tpu_custom_call.1} parent=1 // pred_region
      %114 = dma.done [#allocation12], 2048
    $region53: #{tpu_custom_call.1} parent=1 // pred_fallthru
      _
    %v115 = vld [vmem:[#allocation2] sm:$0xff]
    %v116 = vpack.c.bf16 %v115, %v115
    %v117 = vld [vmem:[#allocation5] sm:$0xff]
    %v118 = vld [vmem:[#allocation5 + $0x8] sm:$0xff]
    %v119 = vld [vmem:[#allocation5 + $0x10] sm:$0xff]
    %v120 = vld [vmem:[#allocation5 + $0x18] sm:$0xff]
    %v121 = vld [vmem:[#allocation5 + $0x20] sm:$0xff]
    %v122 = vld [vmem:[#allocation5 + $0x28] sm:$0xff]
    %v123 = vld [vmem:[#allocation5 + $0x30] sm:$0xff]
    %v124 = vld [vmem:[#allocation5 + $0x38] sm:$0xff]
    %v125 = vld [vmem:[#allocation5 + $0x40] sm:$0xff]
    %v126 = vld [vmem:[#allocation5 + $0x48] sm:$0xff]
    %v127 = vld [vmem:[#allocation5 + $0x50] sm:$0xff]
    %v128 = vld [vmem:[#allocation5 + $0x58] sm:$0xff]
    %v129 = vld [vmem:[#allocation5 + $0x60] sm:$0xff]
    %v130 = vld [vmem:[#allocation5 + $0x68] sm:$0xff]
    %v131 = vld [vmem:[#allocation5 + $0x70] sm:$0xff]
    %v132 = vld [vmem:[#allocation5 + $0x78] sm:$0xff]
    %v133 = vld [vmem:[#allocation5 + $0x80] sm:$0xff]
    %v134 = vld [vmem:[#allocation5 + $0x88] sm:$0xff]
    %v135 = vld [vmem:[#allocation5 + $0x90] sm:$0xff]
    %v136 = vld [vmem:[#allocation5 + $0x98] sm:$0xff]
    %v137 = vld [vmem:[#allocation5 + $0xa0] sm:$0xff]
    %v138 = vld [vmem:[#allocation5 + $0xa8] sm:$0xff]
    %v139 = vld [vmem:[#allocation5 + $0xb0] sm:$0xff]
    %v140 = vld [vmem:[#allocation5 + $0xb8] sm:$0xff]
    %v141 = vld [vmem:[#allocation5 + $0xc0] sm:$0xff]
    %v142 = vld [vmem:[#allocation5 + $0xc8] sm:$0xff]
    %v143 = vld [vmem:[#allocation5 + $0xd0] sm:$0xff]
    %v144 = vld [vmem:[#allocation5 + $0xd8] sm:$0xff]
    %v145 = vld [vmem:[#allocation5 + $0xe0] sm:$0xff]
    %v146 = vld [vmem:[#allocation5 + $0xe8] sm:$0xff]
    %v147 = vld [vmem:[#allocation5 + $0xf0] sm:$0xff]
    %v148 = vld [vmem:[#allocation5 + $0xf8] sm:$0xff]
    %v181 = vunpack.c.l.b16 %v117
    %v182 = vunpack.c.h.b16 %v117
    %v183 = vunpack.c.l.b16 %v118
    %v184 = vunpack.c.h.b16 %v118
    %v185 = vunpack.c.l.b16 %v119
    %v186 = vunpack.c.h.b16 %v119
    %v187 = vunpack.c.l.b16 %v120
    %v188 = vunpack.c.h.b16 %v120
    %v189 = vunpack.c.l.b16 %v121
    %v190 = vunpack.c.h.b16 %v121
    %v191 = vunpack.c.l.b16 %v122
    %v192 = vunpack.c.h.b16 %v122
    %v193 = vunpack.c.l.b16 %v123
    %v194 = vunpack.c.h.b16 %v123
    %v195 = vunpack.c.l.b16 %v124
    %v196 = vunpack.c.h.b16 %v124
    %v197 = vunpack.c.l.b16 %v125
    %v198 = vunpack.c.h.b16 %v125
    %v199 = vunpack.c.l.b16 %v126
    %v200 = vunpack.c.h.b16 %v126
    %v201 = vunpack.c.l.b16 %v127
    %v202 = vunpack.c.h.b16 %v127
    %v203 = vunpack.c.l.b16 %v128
    %v204 = vunpack.c.h.b16 %v128
    %v205 = vunpack.c.l.b16 %v129
    %v206 = vunpack.c.h.b16 %v129
    %v207 = vunpack.c.l.b16 %v130
    %v208 = vunpack.c.h.b16 %v130
    %v209 = vunpack.c.l.b16 %v131
    %v210 = vunpack.c.h.b16 %v131
    %v211 = vunpack.c.l.b16 %v132
    %v212 = vunpack.c.h.b16 %v132
    %v213 = vunpack.c.l.b16 %v133
    %v214 = vunpack.c.h.b16 %v133
    %v215 = vunpack.c.l.b16 %v134
    %v216 = vunpack.c.h.b16 %v134
    %v217 = vunpack.c.l.b16 %v135
    %v218 = vunpack.c.h.b16 %v135
    %v219 = vunpack.c.l.b16 %v136
    %v220 = vunpack.c.h.b16 %v136
    %v221 = vunpack.c.l.b16 %v137
    %v222 = vunpack.c.h.b16 %v137
    %v223 = vunpack.c.l.b16 %v138
    %v224 = vunpack.c.h.b16 %v138
    %v225 = vunpack.c.l.b16 %v139
    %v226 = vunpack.c.h.b16 %v139
    %v227 = vunpack.c.l.b16 %v140
    %v228 = vunpack.c.h.b16 %v140
    %v229 = vunpack.c.l.b16 %v141
    %v230 = vunpack.c.h.b16 %v141
    %v231 = vunpack.c.l.b16 %v142
    %v232 = vunpack.c.h.b16 %v142
    %v233 = vunpack.c.l.b16 %v143
    %v234 = vunpack.c.h.b16 %v143
    %v235 = vunpack.c.l.b16 %v144
    %v236 = vunpack.c.h.b16 %v144
    %v237 = vunpack.c.l.b16 %v145
    %v238 = vunpack.c.h.b16 %v145
    %v239 = vunpack.c.l.b16 %v146
    %v240 = vunpack.c.h.b16 %v146
    %v241 = vunpack.c.l.b16 %v147
    %v242 = vunpack.c.h.b16 %v147
    %v243 = vunpack.c.l.b16 %v148
    %v244 = vunpack.c.h.b16 %v148
    %v245 = vpack.c.b16 %v185, %v181
    %v246 = vpack.c.b16 %v186, %v182
    %v247 = vpack.c.b16 %v187, %v183
    %v248 = vpack.c.b16 %v188, %v184
    %v249 = vpack.c.b16 %v193, %v189
    %v250 = vpack.c.b16 %v194, %v190
    %v251 = vpack.c.b16 %v195, %v191
    %v252 = vpack.c.b16 %v196, %v192
    %v253 = vpack.c.b16 %v201, %v197
    %v254 = vpack.c.b16 %v202, %v198
    %v255 = vpack.c.b16 %v203, %v199
    %v256 = vpack.c.b16 %v204, %v200
    %v257 = vpack.c.b16 %v209, %v205
    %v258 = vpack.c.b16 %v210, %v206
    %v259 = vpack.c.b16 %v211, %v207
    %v260 = vpack.c.b16 %v212, %v208
    %v261 = vpack.c.b16 %v217, %v213
    %v262 = vpack.c.b16 %v218, %v214
    %v263 = vpack.c.b16 %v219, %v215
    %v264 = vpack.c.b16 %v220, %v216
    %v265 = vpack.c.b16 %v225, %v221
    %v266 = vpack.c.b16 %v226, %v222
    %v267 = vpack.c.b16 %v227, %v223
    %v268 = vpack.c.b16 %v228, %v224
    %v269 = vpack.c.b16 %v233, %v229
    %v270 = vpack.c.b16 %v234, %v230
    %v271 = vpack.c.b16 %v235, %v231
    %v272 = vpack.c.b16 %v236, %v232
    %v273 = vpack.c.b16 %v241, %v237
    %v274 = vpack.c.b16 %v242, %v238
    %v275 = vpack.c.b16 %v243, %v239
    %v276 = vpack.c.b16 %v244, %v240
    %309 = vmatpush.bf16.msra.mxu0 %v273
    %310 = vmatpush.bf16.msra.mxu0 %v269
    %311 = vmatpush.bf16.msra.mxu0 %v265
    %312 = vmatpush.bf16.msra.mxu0 %v261
    %313 = vmatpush.bf16.msra.mxu0 %v257
    %314 = vmatpush.bf16.msra.mxu0 %v253
    %315 = vmatpush.bf16.msra.mxu0 %v249
    %316 = vmatpush.bf16.msra.mxu0 %v245
    %317 = vmatmul.bf16.gmra.mxu0 %v116
    %v318 = vpop.f32.mrf.mxu0
    %v319 = vadd.f32 0.0, %v318
    %v320 = vpop.f32.mrf.mxu0
    %321 = vdwg.mxu0
    %322 = vmatpush.bf16.msra.mxu0 %v274
    %323 = vmatpush.bf16.msra.mxu0 %v270
    %324 = vmatpush.bf16.msra.mxu0 %v266
    %325 = vmatpush.bf16.msra.mxu0 %v262
    %326 = vmatpush.bf16.msra.mxu0 %v258
    %327 = vmatpush.bf16.msra.mxu0 %v254
    %328 = vmatpush.bf16.msra.mxu0 %v250
    %329 = vmatpush.bf16.msra.mxu0 %v246
    %330 = vmatmul.bf16.gmra.mxu0 %v116
    %v331 = vpop.f32.mrf.mxu0
    %v332 = vadd.f32 0.0, %v331
    %v333 = vpop.f32.mrf.mxu0
    %334 = vdwg.mxu0
    %335 = vmatpush.bf16.msra.mxu0 %v275
    %336 = vmatpush.bf16.msra.mxu0 %v271
    %337 = vmatpush.bf16.msra.mxu0 %v267
    %338 = vmatpush.bf16.msra.mxu0 %v263
    %339 = vmatpush.bf16.msra.mxu0 %v259
    %340 = vmatpush.bf16.msra.mxu0 %v255
    %341 = vmatpush.bf16.msra.mxu0 %v251
    %342 = vmatpush.bf16.msra.mxu0 %v247
    %343 = vmatmul.bf16.gmra.mxu0 %v116
    %v344 = vpop.f32.mrf.mxu0
    %v345 = vadd.f32 0.0, %v344
    %v346 = vpop.f32.mrf.mxu0
    %347 = vdwg.mxu0
    %348 = vmatpush.bf16.msra.mxu0 %v276
    %349 = vmatpush.bf16.msra.mxu0 %v272
    %350 = vmatpush.bf16.msra.mxu0 %v268
    %351 = vmatpush.bf16.msra.mxu0 %v264
    %352 = vmatpush.bf16.msra.mxu0 %v260
    %353 = vmatpush.bf16.msra.mxu0 %v256
    %354 = vmatpush.bf16.msra.mxu0 %v252
    %355 = vmatpush.bf16.msra.mxu0 %v248
    %356 = vmatmul.bf16.gmra.mxu0 %v116
    %v357 = vpop.f32.mrf.mxu0
    %v358 = vadd.f32 0.0, %v357
    %v359 = vpop.f32.mrf.mxu0
    %360 = vdwg.mxu0
    %v361 = vld [vmem:[#allocation7] sm:$0xff]
    %v362 = vrot.slane %v319, 4
    %v363 = vadd.f32 %v319, %v362
    %v364 = vrot.slane %v363, 2
    %v365 = vadd.f32 %v363, %v364
    %v366 = vrot.slane %v365, 1
    %v367 = vadd.f32 %v365, %v366
    %v368 = vrot.slane %v332, 4
    %v369 = vadd.f32 %v332, %v368
    %v370 = vrot.slane %v369, 2
    %v371 = vadd.f32 %v369, %v370
    %v372 = vrot.slane %v371, 1
    %v373 = vadd.f32 %v371, %v372
    %v374 = vrot.slane %v345, 4
    %v375 = vadd.f32 %v345, %v374
    %v376 = vrot.slane %v375, 2
    %v377 = vadd.f32 %v375, %v376
    %v378 = vrot.slane %v377, 1
    %v379 = vadd.f32 %v377, %v378
    %v380 = vrot.slane %v358, 4
    %v381 = vadd.f32 %v358, %v380
    %v382 = vrot.slane %v381, 2
    %v383 = vadd.f32 %v381, %v382
    %v384 = vrot.slane %v383, 1
    %v385 = vadd.f32 %v383, %v384
    %v386 = vrcp.pop 8.0
    %v387 = vmul.f32 8.0, %v386
    %v388 = vsub.f32 1.0, %v387
    %v389 = vmul.f32 %v386, %v388
    %v390 = vadd.f32 %v386, %v389
    %vm391 = vweird.f32 %v386
    %v392 = vsel %vm391, %v386, %v390
    %v393 = vmul.f32 %v367, %v392
    %v394 = vmul.f32 %v373, %v392
    %v395 = vmul.f32 %v379, %v392
    %v396 = vmul.f32 %v385, %v392
    %v397 = vsub.f32 %v319, %v393
    %v398 = vsub.f32 %v332, %v394
    %v399 = vsub.f32 %v345, %v395
    %v400 = vsub.f32 %v358, %v396
    %v401 = vmul.f32 %v397, %v397
    %v402 = vmul.f32 %v398, %v398
    %v403 = vmul.f32 %v399, %v399
    %v404 = vmul.f32 %v400, %v400
    %v405 = vrot.slane %v401, 4
    %v406 = vadd.f32 %v401, %v405
    %v407 = vrot.slane %v406, 2
    %v408 = vadd.f32 %v406, %v407
    %v409 = vrot.slane %v408, 1
    %v410 = vadd.f32 %v408, %v409
    %v411 = vrot.slane %v402, 4
    %v412 = vadd.f32 %v402, %v411
    %v413 = vrot.slane %v412, 2
    %v414 = vadd.f32 %v412, %v413
    %v415 = vrot.slane %v414, 1
    %v416 = vadd.f32 %v414, %v415
    %v417 = vrot.slane %v403, 4
    %v418 = vadd.f32 %v403, %v417
    %v419 = vrot.slane %v418, 2
    %v420 = vadd.f32 %v418, %v419
    %v421 = vrot.slane %v420, 1
    %v422 = vadd.f32 %v420, %v421
    %v423 = vrot.slane %v404, 4
    %v424 = vadd.f32 %v404, %v423
    %v425 = vrot.slane %v424, 2
    %v426 = vadd.f32 %v424, %v425
    %v427 = vrot.slane %v426, 1
    %v428 = vadd.f32 %v426, %v427
    %v429 = vmul.f32 %v410, %v392
    %v430 = vmul.f32 %v416, %v392
    %v431 = vmul.f32 %v422, %v392
    %v432 = vmul.f32 %v428, %v392
    %v433 = vadd.f32 %v429, 1e-05
    %v434 = vadd.f32 %v430, 1e-05
    %v435 = vadd.f32 %v431, 1e-05
    %v436 = vadd.f32 %v432, 1e-05
    %v437 = vrsqrt.pop %v433
    %v438 = vmul.f32 %v437, %v433
    %v439 = vmul.f32 %v438, %v437
    %v440 = vmul.f32 0.5, %v439
    %v441 = vsub.f32 1.5, %v440
    %v442 = vmul.f32 %v437, %v441
    %vm443 = vweird.f32 %v433
    %vm444 = vweird.f32 %v437
    %vm445 = vmor %vm443, %vm444
    %v446 = vsel %vm445, %v437, %v442
    %v447 = vrsqrt.pop %v434
    %v448 = vmul.f32 %v447, %v434
    %v449 = vmul.f32 %v448, %v447
    %v450 = vmul.f32 0.5, %v449
    %v451 = vsub.f32 1.5, %v450
    %v452 = vmul.f32 %v447, %v451
    %vm453 = vweird.f32 %v434
    %vm454 = vweird.f32 %v447
    %vm455 = vmor %vm453, %vm454
    %v456 = vsel %vm455, %v447, %v452
    %v457 = vrsqrt.pop %v435
    %v458 = vmul.f32 %v457, %v435
    %v459 = vmul.f32 %v458, %v457
    %v460 = vmul.f32 0.5, %v459
    %v461 = vsub.f32 1.5, %v460
    %v462 = vmul.f32 %v457, %v461
    %vm463 = vweird.f32 %v435
    %vm464 = vweird.f32 %v457
    %vm465 = vmor %vm463, %vm464
    %v466 = vsel %vm465, %v457, %v462
    %v467 = vrsqrt.pop %v436
    %v468 = vmul.f32 %v467, %v436
    %v469 = vmul.f32 %v468, %v467
    %v470 = vmul.f32 0.5, %v469
    %v471 = vsub.f32 1.5, %v470
    %v472 = vmul.f32 %v467, %v471
    %vm473 = vweird.f32 %v436
    %vm474 = vweird.f32 %v467
    %vm475 = vmor %vm473, %vm474
    %v476 = vsel %vm475, %v467, %v472
    %v481 = vrot.slane %v456, 6
    %v482 = vrot.slane %v466, 4
    %v483 = vrot.slane %v476, 2
    %vm484 = vcmask 1041408
    %v485 = vsel %vm484, %v446, %v481
    %vm486 = vcmask 1045508
    %v487 = vsel %vm486, %v482, %v483
    %vm488 = vcmask 1043456
    %v489 = vsel %vm488, %v485, %v487
    %v491 = vmul.f32 %v361, %v489
    %v493 = vperm.slane %v491, 0
    %v494 = vperm.slane %v491, 2
    %v495 = vperm.slane %v491, 4
    %v496 = vperm.slane %v491, 6
    %v501 = vmul.f32 %v393, %v493
    %v502 = vmul.f32 %v394, %v494
    %v503 = vmul.f32 %v395, %v495
    %v504 = vmul.f32 %v396, %v496
    %v509 = vrot.slane %v502, 6
    %v510 = vrot.slane %v503, 4
    %v511 = vrot.slane %v504, 2
    %v512 = vsel %vm484, %v501, %v509
    %v513 = vsel %vm486, %v510, %v511
    %v514 = vsel %vm488, %v512, %v513
    %v515 = vrot.slane %v514, 7
    %v517 = vsub.f32 %v361, %v515
    %v518 = vperm.slane %v493, 0
    %v519 = vperm.slane %v494, 0
    %v520 = vperm.slane %v495, 0
    %v521 = vperm.slane %v496, 0
    %v522 = vmul.f32 %v319, %v518
    %v523 = vmul.f32 %v332, %v519
    %v524 = vmul.f32 %v345, %v520
    %v525 = vmul.f32 %v358, %v521
    %v527 = vperm.slane %v517, 1
    %v528 = vperm.slane %v517, 3
    %v529 = vperm.slane %v517, 5
    %v530 = vperm.slane %v517, 7
    %v535 = vperm.slane %v527, 1
    %v536 = vperm.slane %v528, 1
    %v537 = vperm.slane %v529, 1
    %v538 = vperm.slane %v530, 1
    %v539 = vadd.f32 %v522, %v535
    %v540 = vadd.f32 %v523, %v536
    %v541 = vadd.f32 %v524, %v537
    %v542 = vadd.f32 %v525, %v538
    %v543 = vmul.f32 %v539, 0.01
    %v544 = vmul.f32 %v540, 0.01
    %v545 = vmul.f32 %v541, 0.01
    %v546 = vmul.f32 %v542, 0.01
    %v547 = vmax.f32 %v539, %v543
    %v548 = vmax.f32 %v540, %v544
    %v549 = vmax.f32 %v541, %v545
    %v550 = vmax.f32 %v542, %v546
    %v551 = vpack.c.bf16 %v547, %v547
    %v552 = vpack.c.bf16 %v548, %v548
    %v553 = vpack.c.bf16 %v549, %v549
    %v554 = vpack.c.bf16 %v550, %v550
    %v555 = vld [vmem:[#allocation8] sm:$0xff]
    %v556 = vld [vmem:[#allocation8 + $0x8] sm:$0xff]
    %v557 = vld [vmem:[#allocation8 + $0x10] sm:$0xff]
    %v558 = vld [vmem:[#allocation8 + $0x18] sm:$0xff]
    %v559 = vld [vmem:[#allocation8 + $0x20] sm:$0xff]
    %v560 = vld [vmem:[#allocation8 + $0x28] sm:$0xff]
    %v561 = vld [vmem:[#allocation8 + $0x30] sm:$0xff]
    %v562 = vld [vmem:[#allocation8 + $0x38] sm:$0xff]
    %v563 = vld [vmem:[#allocation8 + $0x40] sm:$0xff]
    %v564 = vld [vmem:[#allocation8 + $0x48] sm:$0xff]
    %v565 = vld [vmem:[#allocation8 + $0x50] sm:$0xff]
    %v566 = vld [vmem:[#allocation8 + $0x58] sm:$0xff]
    %v567 = vld [vmem:[#allocation8 + $0x60] sm:$0xff]
    %v568 = vld [vmem:[#allocation8 + $0x68] sm:$0xff]
    %v569 = vld [vmem:[#allocation8 + $0x70] sm:$0xff]
    %v570 = vld [vmem:[#allocation8 + $0x78] sm:$0xff]
    %v571 = vld [vmem:[#allocation8 + $0x80] sm:$0xff]
    %v572 = vld [vmem:[#allocation8 + $0x88] sm:$0xff]
    %v573 = vld [vmem:[#allocation8 + $0x90] sm:$0xff]
    %v574 = vld [vmem:[#allocation8 + $0x98] sm:$0xff]
    %v575 = vld [vmem:[#allocation8 + $0xa0] sm:$0xff]
    %v576 = vld [vmem:[#allocation8 + $0xa8] sm:$0xff]
    %v577 = vld [vmem:[#allocation8 + $0xb0] sm:$0xff]
    %v578 = vld [vmem:[#allocation8 + $0xb8] sm:$0xff]
    %v579 = vld [vmem:[#allocation8 + $0xc0] sm:$0xff]
    %v580 = vld [vmem:[#allocation8 + $0xc8] sm:$0xff]
    %v581 = vld [vmem:[#allocation8 + $0xd0] sm:$0xff]
    %v582 = vld [vmem:[#allocation8 + $0xd8] sm:$0xff]
    %v583 = vld [vmem:[#allocation8 + $0xe0] sm:$0xff]
    %v584 = vld [vmem:[#allocation8 + $0xe8] sm:$0xff]
    %v585 = vld [vmem:[#allocation8 + $0xf0] sm:$0xff]
    %v586 = vld [vmem:[#allocation8 + $0xf8] sm:$0xff]
    %v587 = vld [vmem:[#allocation8 + $0x100] sm:$0xff]
    %v588 = vld [vmem:[#allocation8 + $0x108] sm:$0xff]
    %v589 = vld [vmem:[#allocation8 + $0x110] sm:$0xff]
    %v590 = vld [vmem:[#allocation8 + $0x118] sm:$0xff]
    %v591 = vld [vmem:[#allocation8 + $0x120] sm:$0xff]
    %v592 = vld [vmem:[#allocation8 + $0x128] sm:$0xff]
    %v593 = vld [vmem:[#allocation8 + $0x130] sm:$0xff]
    %v594 = vld [vmem:[#allocation8 + $0x138] sm:$0xff]
    %v595 = vld [vmem:[#allocation8 + $0x140] sm:$0xff]
    %v596 = vld [vmem:[#allocation8 + $0x148] sm:$0xff]
    %v597 = vld [vmem:[#allocation8 + $0x150] sm:$0xff]
    %v598 = vld [vmem:[#allocation8 + $0x158] sm:$0xff]
    %v599 = vld [vmem:[#allocation8 + $0x160] sm:$0xff]
    %v600 = vld [vmem:[#allocation8 + $0x168] sm:$0xff]
    %v601 = vld [vmem:[#allocation8 + $0x170] sm:$0xff]
    %v602 = vld [vmem:[#allocation8 + $0x178] sm:$0xff]
    %v603 = vld [vmem:[#allocation8 + $0x180] sm:$0xff]
    %v604 = vld [vmem:[#allocation8 + $0x188] sm:$0xff]
    %v605 = vld [vmem:[#allocation8 + $0x190] sm:$0xff]
    %v606 = vld [vmem:[#allocation8 + $0x198] sm:$0xff]
    %v607 = vld [vmem:[#allocation8 + $0x1a0] sm:$0xff]
    %v608 = vld [vmem:[#allocation8 + $0x1a8] sm:$0xff]
    %v609 = vld [vmem:[#allocation8 + $0x1b0] sm:$0xff]
    %v610 = vld [vmem:[#allocation8 + $0x1b8] sm:$0xff]
    %v611 = vld [vmem:[#allocation8 + $0x1c0] sm:$0xff]
    %v612 = vld [vmem:[#allocation8 + $0x1c8] sm:$0xff]
    %v613 = vld [vmem:[#allocation8 + $0x1d0] sm:$0xff]
    %v614 = vld [vmem:[#allocation8 + $0x1d8] sm:$0xff]
    %v615 = vld [vmem:[#allocation8 + $0x1e0] sm:$0xff]
    %v616 = vld [vmem:[#allocation8 + $0x1e8] sm:$0xff]
    %v617 = vld [vmem:[#allocation8 + $0x1f0] sm:$0xff]
    %v618 = vld [vmem:[#allocation8 + $0x1f8] sm:$0xff]
    %v683 = vunpack.c.l.b16 %v555
    %v684 = vunpack.c.h.b16 %v555
    %v685 = vunpack.c.l.b16 %v556
    %v686 = vunpack.c.h.b16 %v556
    %v687 = vunpack.c.l.b16 %v557
    %v688 = vunpack.c.h.b16 %v557
    %v689 = vunpack.c.l.b16 %v558
    %v690 = vunpack.c.h.b16 %v558
    %v691 = vunpack.c.l.b16 %v559
    %v692 = vunpack.c.h.b16 %v559
    %v693 = vunpack.c.l.b16 %v560
    %v694 = vunpack.c.h.b16 %v560
    %v695 = vunpack.c.l.b16 %v561
    %v696 = vunpack.c.h.b16 %v561
    %v697 = vunpack.c.l.b16 %v562
    %v698 = vunpack.c.h.b16 %v562
    %v699 = vunpack.c.l.b16 %v563
    %v700 = vunpack.c.h.b16 %v563
    %v701 = vunpack.c.l.b16 %v564
    %v702 = vunpack.c.h.b16 %v564
    %v703 = vunpack.c.l.b16 %v565
    %v704 = vunpack.c.h.b16 %v565
    %v705 = vunpack.c.l.b16 %v566
    %v706 = vunpack.c.h.b16 %v566
    %v707 = vunpack.c.l.b16 %v567
    %v708 = vunpack.c.h.b16 %v567
    %v709 = vunpack.c.l.b16 %v568
    %v710 = vunpack.c.h.b16 %v568
    %v711 = vunpack.c.l.b16 %v569
    %v712 = vunpack.c.h.b16 %v569
    %v713 = vunpack.c.l.b16 %v570
    %v714 = vunpack.c.h.b16 %v570
    %v715 = vunpack.c.l.b16 %v571
    %v716 = vunpack.c.h.b16 %v571
    %v717 = vunpack.c.l.b16 %v572
    %v718 = vunpack.c.h.b16 %v572
    %v719 = vunpack.c.l.b16 %v573
    %v720 = vunpack.c.h.b16 %v573
    %v721 = vunpack.c.l.b16 %v574
    %v722 = vunpack.c.h.b16 %v574
    %v723 = vunpack.c.l.b16 %v575
    %v724 = vunpack.c.h.b16 %v575
    %v725 = vunpack.c.l.b16 %v576
    %v726 = vunpack.c.h.b16 %v576
    %v727 = vunpack.c.l.b16 %v577
    %v728 = vunpack.c.h.b16 %v577
    %v729 = vunpack.c.l.b16 %v578
    %v730 = vunpack.c.h.b16 %v578
    %v731 = vunpack.c.l.b16 %v579
    %v732 = vunpack.c.h.b16 %v579
    %v733 = vunpack.c.l.b16 %v580
    %v734 = vunpack.c.h.b16 %v580
    %v735 = vunpack.c.l.b16 %v581
    %v736 = vunpack.c.h.b16 %v581
    %v737 = vunpack.c.l.b16 %v582
    %v738 = vunpack.c.h.b16 %v582
    %v739 = vunpack.c.l.b16 %v583
    %v740 = vunpack.c.h.b16 %v583
    %v741 = vunpack.c.l.b16 %v584
    %v742 = vunpack.c.h.b16 %v584
    %v743 = vunpack.c.l.b16 %v585
    %v744 = vunpack.c.h.b16 %v585
    %v745 = vunpack.c.l.b16 %v586
    %v746 = vunpack.c.h.b16 %v586
    %v747 = vunpack.c.l.b16 %v587
    %v748 = vunpack.c.h.b16 %v587
    %v749 = vunpack.c.l.b16 %v588
    %v750 = vunpack.c.h.b16 %v588
    %v751 = vunpack.c.l.b16 %v589
    %v752 = vunpack.c.h.b16 %v589
    %v753 = vunpack.c.l.b16 %v590
    %v754 = vunpack.c.h.b16 %v590
    %v755 = vunpack.c.l.b16 %v591
    %v756 = vunpack.c.h.b16 %v591
    %v757 = vunpack.c.l.b16 %v592
    %v758 = vunpack.c.h.b16 %v592
    %v759 = vunpack.c.l.b16 %v593
    %v760 = vunpack.c.h.b16 %v593
    %v761 = vunpack.c.l.b16 %v594
    %v762 = vunpack.c.h.b16 %v594
    %v763 = vunpack.c.l.b16 %v595
    %v764 = vunpack.c.h.b16 %v595
    %v765 = vunpack.c.l.b16 %v596
    %v766 = vunpack.c.h.b16 %v596
    %v767 = vunpack.c.l.b16 %v597
    %v768 = vunpack.c.h.b16 %v597
    %v769 = vunpack.c.l.b16 %v598
    %v770 = vunpack.c.h.b16 %v598
    %v771 = vunpack.c.l.b16 %v599
    %v772 = vunpack.c.h.b16 %v599
    %v773 = vunpack.c.l.b16 %v600
    %v774 = vunpack.c.h.b16 %v600
    %v775 = vunpack.c.l.b16 %v601
    %v776 = vunpack.c.h.b16 %v601
    %v777 = vunpack.c.l.b16 %v602
    %v778 = vunpack.c.h.b16 %v602
    %v779 = vunpack.c.l.b16 %v603
    %v780 = vunpack.c.h.b16 %v603
    %v781 = vunpack.c.l.b16 %v604
    %v782 = vunpack.c.h.b16 %v604
    %v783 = vunpack.c.l.b16 %v605
    %v784 = vunpack.c.h.b16 %v605
    %v785 = vunpack.c.l.b16 %v606
    %v786 = vunpack.c.h.b16 %v606
    %v787 = vunpack.c.l.b16 %v607
    %v788 = vunpack.c.h.b16 %v607
    %v789 = vunpack.c.l.b16 %v608
    %v790 = vunpack.c.h.b16 %v608
    %v791 = vunpack.c.l.b16 %v609
    %v792 = vunpack.c.h.b16 %v609
    %v793 = vunpack.c.l.b16 %v610
    %v794 = vunpack.c.h.b16 %v610
    %v795 = vunpack.c.l.b16 %v611
    %v796 = vunpack.c.h.b16 %v611
    %v797 = vunpack.c.l.b16 %v612
    %v798 = vunpack.c.h.b16 %v612
    %v799 = vunpack.c.l.b16 %v613
    %v800 = vunpack.c.h.b16 %v613
    %v801 = vunpack.c.l.b16 %v614
    %v802 = vunpack.c.h.b16 %v614
    %v803 = vunpack.c.l.b16 %v615
    %v804 = vunpack.c.h.b16 %v615
    %v805 = vunpack.c.l.b16 %v616
    %v806 = vunpack.c.h.b16 %v616
    %v807 = vunpack.c.l.b16 %v617
    %v808 = vunpack.c.h.b16 %v617
    %v809 = vunpack.c.l.b16 %v618
    %v810 = vunpack.c.h.b16 %v618
    %v811 = vpack.c.b16 %v685, %v683
    %v812 = vpack.c.b16 %v686, %v684
    %v813 = vpack.c.b16 %v689, %v687
    %v814 = vpack.c.b16 %v690, %v688
    %v815 = vpack.c.b16 %v693, %v691
    %v816 = vpack.c.b16 %v694, %v692
    %v817 = vpack.c.b16 %v697, %v695
    %v818 = vpack.c.b16 %v698, %v696
    %v819 = vpack.c.b16 %v701, %v699
    %v820 = vpack.c.b16 %v702, %v700
    %v821 = vpack.c.b16 %v705, %v703
    %v822 = vpack.c.b16 %v706, %v704
    %v823 = vpack.c.b16 %v709, %v707
    %v824 = vpack.c.b16 %v710, %v708
    %v825 = vpack.c.b16 %v713, %v711
    %v826 = vpack.c.b16 %v714, %v712
    %v827 = vpack.c.b16 %v717, %v715
    %v828 = vpack.c.b16 %v718, %v716
    %v829 = vpack.c.b16 %v721, %v719
    %v830 = vpack.c.b16 %v722, %v720
    %v831 = vpack.c.b16 %v725, %v723
    %v832 = vpack.c.b16 %v726, %v724
    %v833 = vpack.c.b16 %v729, %v727
    %v834 = vpack.c.b16 %v730, %v728
    %v835 = vpack.c.b16 %v733, %v731
    %v836 = vpack.c.b16 %v734, %v732
    %v837 = vpack.c.b16 %v737, %v735
    %v838 = vpack.c.b16 %v738, %v736
    %v839 = vpack.c.b16 %v741, %v739
    %v840 = vpack.c.b16 %v742, %v740
    %v841 = vpack.c.b16 %v745, %v743
    %v842 = vpack.c.b16 %v746, %v744
    %v843 = vpack.c.b16 %v749, %v747
    %v844 = vpack.c.b16 %v750, %v748
    %v845 = vpack.c.b16 %v753, %v751
    %v846 = vpack.c.b16 %v754, %v752
    %v847 = vpack.c.b16 %v757, %v755
    %v848 = vpack.c.b16 %v758, %v756
    %v849 = vpack.c.b16 %v761, %v759
    %v850 = vpack.c.b16 %v762, %v760
    %v851 = vpack.c.b16 %v765, %v763
    %v852 = vpack.c.b16 %v766, %v764
    %v853 = vpack.c.b16 %v769, %v767
    %v854 = vpack.c.b16 %v770, %v768
    %v855 = vpack.c.b16 %v773, %v771
    %v856 = vpack.c.b16 %v774, %v772
    %v857 = vpack.c.b16 %v777, %v775
    %v858 = vpack.c.b16 %v778, %v776
    %v859 = vpack.c.b16 %v781, %v779
    %v860 = vpack.c.b16 %v782, %v780
    %v861 = vpack.c.b16 %v785, %v783
    %v862 = vpack.c.b16 %v786, %v784
    %v863 = vpack.c.b16 %v789, %v787
    %v864 = vpack.c.b16 %v790, %v788
    %v865 = vpack.c.b16 %v793, %v791
    %v866 = vpack.c.b16 %v794, %v792
    %v867 = vpack.c.b16 %v797, %v795
    %v868 = vpack.c.b16 %v798, %v796
    %v869 = vpack.c.b16 %v801, %v799
    %v870 = vpack.c.b16 %v802, %v800
    %v871 = vpack.c.b16 %v805, %v803
    %v872 = vpack.c.b16 %v806, %v804
    %v873 = vpack.c.b16 %v809, %v807
    %v874 = vpack.c.b16 %v810, %v808
    %939 = vmatpush.bf16.msra.mxu0 %v825
    %940 = vmatpush.bf16.msra.mxu0 %v823
    %941 = vmatpush.bf16.msra.mxu0 %v821
    %942 = vmatpush.bf16.msra.mxu0 %v819
    %943 = vmatpush.bf16.msra.mxu0 %v817
    %944 = vmatpush.bf16.msra.mxu0 %v815
    %945 = vmatpush.bf16.msra.mxu0 %v813
    %946 = vmatpush.bf16.msra.mxu0 %v811
    %947 = vmatmul.bf16.gmra.mxu0 %v551
    %v948 = vpop.f32.mrf.mxu0
    %v949 = vadd.f32 0.0, %v948
    %v950 = vpop.f32.mrf.mxu0
    %951 = vdwg.mxu0
    %952 = vmatpush.bf16.msra.mxu0 %v841
    %953 = vmatpush.bf16.msra.mxu0 %v839
    %954 = vmatpush.bf16.msra.mxu0 %v837
    %955 = vmatpush.bf16.msra.mxu0 %v835
    %956 = vmatpush.bf16.msra.mxu0 %v833
    %957 = vmatpush.bf16.msra.mxu0 %v831
    %958 = vmatpush.bf16.msra.mxu0 %v829
    %959 = vmatpush.bf16.msra.mxu0 %v827
    %960 = vmatmul.bf16.gmra.mxu0 %v552
    %v961 = vpop.f32.mrf.mxu0
    %v962 = vadd.f32 %v949, %v961
    %v963 = vpop.f32.mrf.mxu0
    %964 = vdwg.mxu0
    %965 = vmatpush.bf16.msra.mxu0 %v857
    %966 = vmatpush.bf16.msra.mxu0 %v855
    %967 = vmatpush.bf16.msra.mxu0 %v853
    %968 = vmatpush.bf16.msra.mxu0 %v851
    %969 = vmatpush.bf16.msra.mxu0 %v849
    %970 = vmatpush.bf16.msra.mxu0 %v847
    %971 = vmatpush.bf16.msra.mxu0 %v845
    %972 = vmatpush.bf16.msra.mxu0 %v843
    %973 = vmatmul.bf16.gmra.mxu0 %v553
    %v974 = vpop.f32.mrf.mxu0
    %v975 = vadd.f32 %v962, %v974
    %v976 = vpop.f32.mrf.mxu0
    %977 = vdwg.mxu0
    %978 = vmatpush.bf16.msra.mxu0 %v873
    %979 = vmatpush.bf16.msra.mxu0 %v871
    %980 = vmatpush.bf16.msra.mxu0 %v869
    %981 = vmatpush.bf16.msra.mxu0 %v867
    %982 = vmatpush.bf16.msra.mxu0 %v865
    %983 = vmatpush.bf16.msra.mxu0 %v863
    %984 = vmatpush.bf16.msra.mxu0 %v861
    %985 = vmatpush.bf16.msra.mxu0 %v859
    %986 = vmatmul.bf16.gmra.mxu0 %v554
    %v987 = vpop.f32.mrf.mxu0
    %v988 = vadd.f32 %v975, %v987
    %v989 = vpop.f32.mrf.mxu0
    %990 = vdwg.mxu0
    %991 = vmatpush.bf16.msra.mxu0 %v826
    %992 = vmatpush.bf16.msra.mxu0 %v824
    %993 = vmatpush.bf16.msra.mxu0 %v822
    %994 = vmatpush.bf16.msra.mxu0 %v820
    %995 = vmatpush.bf16.msra.mxu0 %v818
    %996 = vmatpush.bf16.msra.mxu0 %v816
    %997 = vmatpush.bf16.msra.mxu0 %v814
    %998 = vmatpush.bf16.msra.mxu0 %v812
    %999 = vmatmul.bf16.gmra.mxu0 %v551
    %v1000 = vpop.f32.mrf.mxu0
    %v1001 = vadd.f32 0.0, %v1000
    %v1002 = vpop.f32.mrf.mxu0
    %1003 = vdwg.mxu0
    %1004 = vmatpush.bf16.msra.mxu0 %v842
    %1005 = vmatpush.bf16.msra.mxu0 %v840
    %1006 = vmatpush.bf16.msra.mxu0 %v838
    %1007 = vmatpush.bf16.msra.mxu0 %v836
    %1008 = vmatpush.bf16.msra.mxu0 %v834
    %1009 = vmatpush.bf16.msra.mxu0 %v832
    %1010 = vmatpush.bf16.msra.mxu0 %v830
    %1011 = vmatpush.bf16.msra.mxu0 %v828
    %1012 = vmatmul.bf16.gmra.mxu0 %v552
    %v1013 = vpop.f32.mrf.mxu0
    %v1014 = vadd.f32 %v1001, %v1013
    %v1015 = vpop.f32.mrf.mxu0
    %1016 = vdwg.mxu0
    %1017 = vmatpush.bf16.msra.mxu0 %v858
    %1018 = vmatpush.bf16.msra.mxu0 %v856
    %1019 = vmatpush.bf16.msra.mxu0 %v854
    %1020 = vmatpush.bf16.msra.mxu0 %v852
    %1021 = vmatpush.bf16.msra.mxu0 %v850
    %1022 = vmatpush.bf16.msra.mxu0 %v848
    %1023 = vmatpush.bf16.msra.mxu0 %v846
    %1024 = vmatpush.bf16.msra.mxu0 %v844
    %1025 = vmatmul.bf16.gmra.mxu0 %v553
    %v1026 = vpop.f32.mrf.mxu0
    %v1027 = vadd.f32 %v1014, %v1026
    %v1028 = vpop.f32.mrf.mxu0
    %1029 = vdwg.mxu0
    %1030 = vmatpush.bf16.msra.mxu0 %v874
    %1031 = vmatpush.bf16.msra.mxu0 %v872
    %1032 = vmatpush.bf16.msra.mxu0 %v870
    %1033 = vmatpush.bf16.msra.mxu0 %v868
    %1034 = vmatpush.bf16.msra.mxu0 %v866
    %1035 = vmatpush.bf16.msra.mxu0 %v864
    %1036 = vmatpush.bf16.msra.mxu0 %v862
    %1037 = vmatpush.bf16.msra.mxu0 %v860
    %1038 = vmatmul.bf16.gmra.mxu0 %v554
    %v1039 = vpop.f32.mrf.mxu0
    %v1040 = vadd.f32 %v1027, %v1039
    %v1041 = vpop.f32.mrf.mxu0
    %1042 = vdwg.mxu0
    %v1043 = vld [vmem:[#allocation10] sm:$0xf]
    %v1044 = vrot.slane %v988, 4
    %v1045 = vadd.f32 %v988, %v1044
    %v1046 = vrot.slane %v1045, 2
    %v1047 = vadd.f32 %v1045, %v1046
    %v1048 = vrot.slane %v1047, 1
    %v1049 = vadd.f32 %v1047, %v1048
    %v1050 = vrot.slane %v1040, 4
    %v1051 = vadd.f32 %v1040, %v1050
    %v1052 = vrot.slane %v1051, 2
    %v1053 = vadd.f32 %v1051, %v1052
    %v1054 = vrot.slane %v1053, 1
    %v1055 = vadd.f32 %v1053, %v1054
    %v1056 = vmul.f32 %v1049, %v392
    %v1057 = vmul.f32 %v1055, %v392
    %v1058 = vsub.f32 %v988, %v1056
    %v1059 = vsub.f32 %v1040, %v1057
    %v1060 = vmul.f32 %v1058, %v1058
    %v1061 = vmul.f32 %v1059, %v1059
    %v1062 = vrot.slane %v1060, 4
    %v1063 = vadd.f32 %v1060, %v1062
    %v1064 = vrot.slane %v1063, 2
    %v1065 = vadd.f32 %v1063, %v1064
    %v1066 = vrot.slane %v1065, 1
    %v1067 = vadd.f32 %v1065, %v1066
    %v1068 = vrot.slane %v1061, 4
    %v1069 = vadd.f32 %v1061, %v1068
    %v1070 = vrot.slane %v1069, 2
    %v1071 = vadd.f32 %v1069, %v1070
    %v1072 = vrot.slane %v1071, 1
    %v1073 = vadd.f32 %v1071, %v1072
    %v1074 = vmul.f32 %v1067, %v392
    %v1075 = vmul.f32 %v1073, %v392
    %v1076 = vadd.f32 %v1074, 1e-05
    %v1077 = vadd.f32 %v1075, 1e-05
    %v1078 = vrsqrt.pop %v1076
    %v1079 = vmul.f32 %v1078, %v1076
    %v1080 = vmul.f32 %v1079, %v1078
    %v1081 = vmul.f32 0.5, %v1080
    %v1082 = vsub.f32 1.5, %v1081
    %v1083 = vmul.f32 %v1078, %v1082
    %vm1084 = vweird.f32 %v1076
    %vm1085 = vweird.f32 %v1078
    %vm1086 = vmor %vm1084, %vm1085
    %v1087 = vsel %vm1086, %v1078, %v1083
    %v1088 = vrsqrt.pop %v1077
    %v1089 = vmul.f32 %v1088, %v1077
    %v1090 = vmul.f32 %v1089, %v1088
    %v1091 = vmul.f32 0.5, %v1090
    %v1092 = vsub.f32 1.5, %v1091
    %v1093 = vmul.f32 %v1088, %v1092
    %vm1094 = vweird.f32 %v1077
    %vm1095 = vweird.f32 %v1088
    %vm1096 = vmor %vm1094, %vm1095
    %v1097 = vsel %vm1096, %v1088, %v1093
    %v1100 = vrot.slane %v1097, 6
    %v1101 = vsel %vm484, %v1087, %v1100
    %v1103 = vmul.f32 %v1043, %v1101
    %v1105 = vperm.slane %v1103, 0
    %v1106 = vperm.slane %v1103, 2
    %v1109 = vmul.f32 %v1056, %v1105
    %v1110 = vmul.f32 %v1057, %v1106
    %v1113 = vrot.slane %v1110, 6
    %v1114 = vsel %vm484, %v1109, %v1113
    %v1115 = vrot.slane %v1114, 7
    %v1117 = vsub.f32 %v1043, %v1115
    %v1118 = vperm.slane %v1105, 0
    %v1119 = vperm.slane %v1106, 0
    %v1120 = vmul.f32 %v988, %v1118
    %v1121 = vmul.f32 %v1040, %v1119
    %v1123 = vperm.slane %v1117, 1
    %v1124 = vperm.slane %v1117, 3
    %v1127 = vperm.slane %v1123, 1
    %v1128 = vperm.slane %v1124, 1
    %v1129 = vadd.f32 %v1120, %v1127
    %v1130 = vadd.f32 %v1121, %v1128
    %v1131 = vmul.f32 %v1129, 0.01
    %v1132 = vmul.f32 %v1130, 0.01
    %v1133 = vmax.f32 %v1129, %v1131
    %v1134 = vmax.f32 %v1130, %v1132
    %v1135 = vpack.c.bf16 %v1133, %v1133
    %v1136 = vpack.c.bf16 %v1134, %v1134
    %v1137 = vld [vmem:[#allocation11] sm:$0xf]
    %v1138 = vld [vmem:[#allocation11 + $0x4] sm:$0xf]
    %v1139 = vld [vmem:[#allocation11 + $0x8] sm:$0xf]
    %v1140 = vld [vmem:[#allocation11 + $0xc] sm:$0xf]
    %v1141 = vld [vmem:[#allocation11 + $0x10] sm:$0xf]
    %v1142 = vld [vmem:[#allocation11 + $0x14] sm:$0xf]
    %v1143 = vld [vmem:[#allocation11 + $0x18] sm:$0xf]
    %v1144 = vld [vmem:[#allocation11 + $0x1c] sm:$0xf]
    %v1145 = vld [vmem:[#allocation11 + $0x20] sm:$0xf]
    %v1146 = vld [vmem:[#allocation11 + $0x24] sm:$0xf]
    %v1147 = vld [vmem:[#allocation11 + $0x28] sm:$0xf]
    %v1148 = vld [vmem:[#allocation11 + $0x2c] sm:$0xf]
    %v1149 = vld [vmem:[#allocation11 + $0x30] sm:$0xf]
    %v1150 = vld [vmem:[#allocation11 + $0x34] sm:$0xf]
    %v1151 = vld [vmem:[#allocation11 + $0x38] sm:$0xf]
    %v1152 = vld [vmem:[#allocation11 + $0x3c] sm:$0xf]
    %v1153 = vld [vmem:[#allocation11 + $0x40] sm:$0xf]
    %v1154 = vld [vmem:[#allocation11 + $0x44] sm:$0xf]
    %v1155 = vld [vmem:[#allocation11 + $0x48] sm:$0xf]
    %v1156 = vld [vmem:[#allocation11 + $0x4c] sm:$0xf]
    %v1157 = vld [vmem:[#allocation11 + $0x50] sm:$0xf]
    %v1158 = vld [vmem:[#allocation11 + $0x54] sm:$0xf]
    %v1159 = vld [vmem:[#allocation11 + $0x58] sm:$0xf]
    %v1160 = vld [vmem:[#allocation11 + $0x5c] sm:$0xf]
    %v1161 = vld [vmem:[#allocation11 + $0x60] sm:$0xf]
    %v1162 = vld [vmem:[#allocation11 + $0x64] sm:$0xf]
    %v1163 = vld [vmem:[#allocation11 + $0x68] sm:$0xf]
    %v1164 = vld [vmem:[#allocation11 + $0x6c] sm:$0xf]
    %v1165 = vld [vmem:[#allocation11 + $0x70] sm:$0xf]
    %v1166 = vld [vmem:[#allocation11 + $0x74] sm:$0xf]
    %v1167 = vld [vmem:[#allocation11 + $0x78] sm:$0xf]
    %v1168 = vld [vmem:[#allocation11 + $0x7c] sm:$0xf]
    %v1169 = vld [vmem:[%s6] sm:$0x1]
    %v1171 = vperm.slane %v1169, 0
    %v1205 = vunpack.c.l.b16 %v1137
    %v1206 = vunpack.c.l.b16 %v1138
    %v1207 = vunpack.c.l.b16 %v1139
    %v1208 = vunpack.c.l.b16 %v1140
    %v1209 = vunpack.c.l.b16 %v1141
    %v1210 = vunpack.c.l.b16 %v1142
    %v1211 = vunpack.c.l.b16 %v1143
    %v1212 = vunpack.c.l.b16 %v1144
    %v1213 = vunpack.c.l.b16 %v1145
    %v1214 = vunpack.c.l.b16 %v1146
    %v1215 = vunpack.c.l.b16 %v1147
    %v1216 = vunpack.c.l.b16 %v1148
    %v1217 = vunpack.c.l.b16 %v1149
    %v1218 = vunpack.c.l.b16 %v1150
    %v1219 = vunpack.c.l.b16 %v1151
    %v1220 = vunpack.c.l.b16 %v1152
    %v1221 = vunpack.c.l.b16 %v1153
    %v1222 = vunpack.c.l.b16 %v1154
    %v1223 = vunpack.c.l.b16 %v1155
    %v1224 = vunpack.c.l.b16 %v1156
    %v1225 = vunpack.c.l.b16 %v1157
    %v1226 = vunpack.c.l.b16 %v1158
    %v1227 = vunpack.c.l.b16 %v1159
    %v1228 = vunpack.c.l.b16 %v1160
    %v1229 = vunpack.c.l.b16 %v1161
    %v1230 = vunpack.c.l.b16 %v1162
    %v1231 = vunpack.c.l.b16 %v1163
    %v1232 = vunpack.c.l.b16 %v1164
    %v1233 = vunpack.c.l.b16 %v1165
    %v1234 = vunpack.c.l.b16 %v1166
    %v1235 = vunpack.c.l.b16 %v1167
    %v1236 = vunpack.c.l.b16 %v1168
    %v1237 = vpack.c.b16 %v1206, %v1205
    %v1238 = vpack.c.b16 %v1208, %v1207
    %v1239 = vpack.c.b16 %v1210, %v1209
    %v1240 = vpack.c.b16 %v1212, %v1211
    %v1241 = vpack.c.b16 %v1214, %v1213
    %v1242 = vpack.c.b16 %v1216, %v1215
    %v1243 = vpack.c.b16 %v1218, %v1217
    %v1244 = vpack.c.b16 %v1220, %v1219
    %v1245 = vpack.c.b16 %v1222, %v1221
    %v1246 = vpack.c.b16 %v1224, %v1223
    %v1247 = vpack.c.b16 %v1226, %v1225
    %v1248 = vpack.c.b16 %v1228, %v1227
    %v1249 = vpack.c.b16 %v1230, %v1229
    %v1250 = vpack.c.b16 %v1232, %v1231
    %v1251 = vpack.c.b16 %v1234, %v1233
    %v1252 = vpack.c.b16 %v1236, %v1235
    %1269 = vmatpush.bf16.msra.mxu0 %v1244
    %1270 = vmatpush.bf16.msra.mxu0 %v1243
    %1271 = vmatpush.bf16.msra.mxu0 %v1242
    %1272 = vmatpush.bf16.msra.mxu0 %v1241
    %1273 = vmatpush.bf16.msra.mxu0 %v1240
    %1274 = vmatpush.bf16.msra.mxu0 %v1239
    %1275 = vmatpush.bf16.msra.mxu0 %v1238
    %1276 = vmatpush.bf16.msra.mxu0 %v1237
    %1277 = vmatmul.bf16.gmra.mxu0 %v1135
    %v1278 = vpop.f32.mrf.mxu0
    %v1279 = vadd.f32 %v1171, %v1278
    %v1280 = vpop.f32.mrf.mxu0
    %1281 = vdwg.mxu0
    %1282 = vmatpush.bf16.msra.mxu0 %v1252
    %1283 = vmatpush.bf16.msra.mxu0 %v1251
    %1284 = vmatpush.bf16.msra.mxu0 %v1250
    %1285 = vmatpush.bf16.msra.mxu0 %v1249
    %1286 = vmatpush.bf16.msra.mxu0 %v1248
    %1287 = vmatpush.bf16.msra.mxu0 %v1247
    %1288 = vmatpush.bf16.msra.mxu0 %v1246
    %1289 = vmatpush.bf16.msra.mxu0 %v1245
    %1290 = vmatmul.bf16.gmra.mxu0 %v1136
    %v1291 = vpop.f32.mrf.mxu0
    %v1292 = vadd.f32 %v1279, %v1291
    %v1293 = vpop.f32.mrf.mxu0
    %1294 = vdwg.mxu0
    %1295 = vst [vmem:[#allocation13] sm:$0xff] %v1292
    // Predicated region
    $region54: #{tpu_custom_call.1} parent=1 // pred_check
      _
    $region55: #{tpu_custom_call.1} parent=1 // pred_check_branch
      %1297 = sbr.rel (0) target = $region57
    $region56: #{tpu_custom_call.1} parent=1 // pred_region
      %1299 = vsyncadd [#allocation4], 0
      %s1301 = sshll.u32 [#allocation13], 4
      %s1302 = int_to_ptr.vmem [resolvable:$true] %s1301
      %s1303 = sshll.u32 %s7, 4
      %s1304 = int_to_ptr.hbm [resolvable:$true] %s1303
      %1306 = dma.vmem_to_hbm [thread:$0]  %s1302, 128, %s1304, [#allocation4]
    $region57: #{tpu_custom_call.1} parent=1 // pred_fallthru
      _
    // Predicated region
    $region58: #{tpu_custom_call.1} parent=1 // pred_check
      _
    $region59: #{tpu_custom_call.1} parent=1 // pred_check_branch
      %1308 = sbr.rel (0) target = $region61
    $region60: #{tpu_custom_call.1} parent=1 // pred_region
      %1310 = dma.done [#allocation4], 128
    $region61: #{tpu_custom_call.1} parent=1 // pred_fallthru
      _
    %1311 = vsyncpa [#allocation3], 1
    %1312 = vsyncpa [#allocation6], 1
    %1313 = vsyncpa [#allocation9], 1
    %1314 = vsyncpa [#allocation12], 1
    %1315 = vsyncpa [#allocation4], 1

</llo_original>
